<compile_context>
chip_gen: v7x
topology: tpu7x:2x2x1
jax: 0.10.0
libtpu: 0.0.40
codegen_flags: <defaults>
</compile_context>

<pallas_src>
import functools

import jax
import jax.numpy as jnp
from jax.experimental import pallas as pl
from jax.experimental.pallas import tpu as pltpu

OUT_FEATURES_DIM = 128            # out_features_dim in the PyTorch script
PARAM_RELU = 0.01                 # LeakyReLU negative slope
XCAP_DIM = 64                     # xcap_dim in the PyTorch script
HIDDEN = 2 * OUT_FEATURES_DIM     # 256

DEFAULT_BATCH_TILE = 4096         # rows per grid step cap (multiple of 8)


def _round_up(n, m):
    return ((n + m - 1) // m) * m


def _pick_batch_tile(batch, batch_tile):
    """Pick (tb, b_pad).

    Prefers a tb that divides the batch exactly (no jnp.pad, no out[:B] copy)
    and yields >=2 grid steps when the batch is big enough (v7x megacore).
    Falls back to padding only when the batch is not a multiple of 8.
    """
    batch = int(batch)
    batch_tile = max(8, _round_up(int(batch_tile), 8))   # defensive rounding
    if batch >= 16:
        half_cap = max(8, _round_up((batch + 1) // 2, 8))   # >=2 grid steps
    else:
        half_cap = max(8, _round_up(batch, 8))
    cap = min(batch_tile, half_cap)

    if batch % 8 == 0:
        # Largest divisor of `batch` that is a multiple of 8 and <= cap.
        d = min(cap, batch)
        d -= d % 8
        while d >= 8:
            if batch % d == 0:
                return d, batch                 # exact tiling: no pad/slice
            d -= 8

    # Fallback: pad the batch up to a multiple of the tile.
    tb = min(cap, _round_up(batch, 8))
    return tb, _round_up(batch, tb)


def _generator_kernel(x_ref, w1_ref, b1_ref, w2_ref, b2_ref, o_ref):
    # x_ref:  [TB, XCAP]   (f32)       w1_ref: [XCAP, HIDDEN] (bf16)
    # b1_ref: [1, HIDDEN]  (f32)       w2_ref: [HIDDEN, IMG]  (bf16)
    # b2_ref: [1, IMG]     (f32)       o_ref:  [TB, IMG]      (f32 or bf16)
    #
    # In-kernel cast of x to the MXU compute dtype (free VPU op, avoids a
    # separate XLA cast pass + extra HBM traffic).
    x_c = x_ref[...].astype(w1_ref.dtype)
    h = jnp.dot(x_c, w1_ref[...], preferred_element_type=jnp.float32)
    h = h + b1_ref[...]                          # f32 bias add   (VPU)
    h = jnp.where(h > 0, h, PARAM_RELU * h)      # LeakyReLU, f32 (VPU)
    y = jnp.dot(h.astype(w2_ref.dtype), w2_ref[...],
                preferred_element_type=jnp.float32)
    y = y + b2_ref[...]                          # f32 bias add   (VPU)
    o_ref[...] = jnp.tanh(y).astype(o_ref.dtype)   # tanh on the EUP


def prepare_params(w1, b1, w2, b2, *, compute_dtype=jnp.bfloat16):
    """One-time param prep (hoisted out of the hot path).

    PyTorch Linear layout is weight [out, in], bias [out]. Store weights
    pre-transposed as [in, out] in the MXU compute dtype; biases as [1, out]
    in f32 so in-kernel elementwise math stays f32.
    """
    return {
        "w1_t": jnp.transpose(w1).astype(compute_dtype),   # [XCAP, HIDDEN]
        "b1": b1.reshape(1, -1).astype(jnp.float32),       # [1, HIDDEN]
        "w2_t": jnp.transpose(w2).astype(compute_dtype),   # [HIDDEN, IMG]
        "b2": b2.reshape(1, -1).astype(jnp.float32),       # [1, IMG]
    }


@functools.partial(jax.jit, static_argnames=("batch_tile", "out_dtype"))
def generator_forward(x, params, *, batch_tile=DEFAULT_BATCH_TILE,
                      out_dtype=None):
    """x: [B, xcap_dim] (f32); params from prepare_params().

    Returns [B, img_dim] in `out_dtype` (default: x.dtype, i.e. f32 to match
    the PyTorch module; pass jnp.bfloat16 to halve output HBM traffic).
    """
    B, xcap = x.shape
    w1_t, b1 = params["w1_t"], params["b1"]
    w2_t, b2 = params["w2_t"], params["b2"]
    img_dim = w2_t.shape[1]
    out_dtype = jnp.dtype(out_dtype) if out_dtype is not None else x.dtype

    tb, b_pad = _pick_batch_tile(B, batch_tile)

    x_in = x
    if b_pad != B:
        x_in = jnp.pad(x, ((0, b_pad - B), (0, 0)))

    out = pl.pallas_call(
        _generator_kernel,
        out_shape=jax.ShapeDtypeStruct((b_pad, img_dim), out_dtype),
        grid=(b_pad // tb,),
        in_specs=[
            pl.BlockSpec((tb, xcap), lambda i: (i, 0)),        # x: batch-tiled
            pl.BlockSpec(w1_t.shape, lambda i: (0, 0)),        # weight-stationary
            pl.BlockSpec(b1.shape, lambda i: (0, 0)),
            pl.BlockSpec(w2_t.shape, lambda i: (0, 0)),
            pl.BlockSpec(b2.shape, lambda i: (0, 0)),
        ],
        out_specs=pl.BlockSpec((tb, img_dim), lambda i: (i, 0)),
        compiler_params=pltpu.CompilerParams(
            dimension_semantics=("parallel",)),
    )(x_in, w1_t, b1, w2_t, b2)

    return out[:B] if b_pad != B else out


def reference_forward(x, w1, b1, w2, b2):
    h = x @ w1.T + b1
    h = jnp.where(h > 0, h, PARAM_RELU * h)
    y = h @ w2.T + b2
    return jnp.tanh(y)


if __name__ == "__main__":
    IMG_DIM = 128  # small flattened image dimension for the demo

    key = jax.random.PRNGKey(0)
    kx, kw1, kb1, kw2, kb2, kx2, kx3 = jax.random.split(key, 7)

    # PyTorch Linear parameter shapes: weight [out, in], bias [out].
    w1 = jax.random.normal(kw1, (HIDDEN, XCAP_DIM), dtype=jnp.float32) * 0.05
    b1 = jax.random.normal(kb1, (HIDDEN,), dtype=jnp.float32) * 0.05
    w2 = jax.random.normal(kw2, (IMG_DIM, HIDDEN), dtype=jnp.float32) * 0.05
    b2 = jax.random.normal(kb2, (IMG_DIM,), dtype=jnp.float32) * 0.05

    params = prepare_params(w1, b1, w2, b2)

    # --- small batch: single-tile, no padding ---
    B = 8
    x = jax.random.normal(kx, (B, XCAP_DIM), dtype=jnp.float32)
    out = jax.block_until_ready(generator_forward(x, params))
    ref = reference_forward(x, w1, b1, w2, b2)
    assert out.shape == (B, IMG_DIM)
    # bf16 matmul inputs with f32 accumulation -> relaxed tolerance vs f32 ref.
    assert jnp.allclose(out, ref, atol=2e-2, rtol=2e-2), "mismatch (B=8)"

    # --- B % 8 == 0: exact 2-step tiling (no pad, no out[:B] copy) ---
    B2 = 2000
    x2 = jax.random.normal(kx2, (B2, XCAP_DIM), dtype=jnp.float32)
    out2 = jax.block_until_ready(generator_forward(x2, params))
    ref2 = reference_forward(x2, w1, b1, w2, b2)
    assert out2.shape == (B2, IMG_DIM)
    assert jnp.allclose(out2, ref2, atol=2e-2, rtol=2e-2), "mismatch (B=2000)"

    # --- ragged batch: exercises the pad + slice fallback ---
    B3 = 37
    x3 = jax.random.normal(kx3, (B3, XCAP_DIM), dtype=jnp.float32)
    out3 = jax.block_until_ready(generator_forward(x3, params))
    ref3 = reference_forward(x3, w1, b1, w2, b2)
    assert out3.shape == (B3, IMG_DIM)
    assert jnp.allclose(out3, ref3, atol=2e-2, rtol=2e-2), "mismatch (B=37)"

    # --- optional bf16 output path (halves output HBM traffic) ---
    out_bf = jax.block_until_ready(
        generator_forward(x2, params, out_dtype=jnp.bfloat16))
    assert out_bf.dtype == jnp.bfloat16
    assert jnp.allclose(out_bf.astype(jnp.float32), ref2, atol=4e-2, rtol=4e-2), \
        "mismatch (bf16 output)"

    print("KERNEL_OK")
</pallas_src>

<mosaic_0001>
module attributes {stable_mosaic.version = 11 : i64} {
  func.func @_generator_kernel(%arg0: i32, %arg1: memref<8x64xf32, #tpu.memory_space<vmem>>, %arg2: memref<64x256xbf16, #tpu.memory_space<vmem>>, %arg3: memref<1x256xf32, #tpu.memory_space<vmem>>, %arg4: memref<256x128xbf16, #tpu.memory_space<vmem>>, %arg5: memref<1x128xf32, #tpu.memory_space<vmem>>, %arg6: memref<8x128xf32, #tpu.memory_space<vmem>>) attributes {dimension_semantics = [#tpu.dimension_semantics<parallel>], iteration_bounds = array<i64: 1>, scalar_prefetch = 0 : i64, scratch_operands = 0 : i64, tpu.core_type = #tpu.core_type<tc>, window_params = [{transform_indices = @transform_0, window_bounds = array<i64: 8, 64>}, {pipeline_mode = #tpu.pipeline_mode<synchronous>, transform_indices = @transform_1, window_bounds = array<i64: 64, 256>}, {pipeline_mode = #tpu.pipeline_mode<synchronous>, transform_indices = @transform_2, window_bounds = array<i64: 1, 256>}, {pipeline_mode = #tpu.pipeline_mode<synchronous>, transform_indices = @transform_3, window_bounds = array<i64: 256, 128>}, {pipeline_mode = #tpu.pipeline_mode<synchronous>, transform_indices = @transform_4, window_bounds = array<i64: 1, 128>}, {transform_indices = @transform_5, window_bounds = array<i64: 8, 128>}]} {
    %c0 = arith.constant 0 : index
    %c0_0 = arith.constant 0 : index
    %0 = vector.load %arg1[%c0, %c0_0] : memref<8x64xf32, #tpu.memory_space<vmem>>, vector<8x64xf32>
    %1 = arith.truncf %0 : vector<8x64xf32> to vector<8x64xbf16>
    %c0_1 = arith.constant 0 : index
    %c0_2 = arith.constant 0 : index
    %2 = vector.load %arg2[%c0_1, %c0_2] : memref<64x256xbf16, #tpu.memory_space<vmem>>, vector<64x256xbf16>
    %cst = arith.constant dense<0.000000e+00> : vector<8x256xf32>
    %3 = tpu.matmul %1, %2, %cst {dimension_numbers = #tpu.dot_dimension_numbers<[1], [0], [0], [1], [0, 0, 1, 1], [], []>} : vector<8x64xbf16>, vector<64x256xbf16>, vector<8x256xf32> -> vector<8x256xf32>
    %c0_3 = arith.constant 0 : index
    %c0_4 = arith.constant 0 : index
    %4 = vector.load %arg3[%c0_3, %c0_4] : memref<1x256xf32, #tpu.memory_space<vmem>>, vector<1x256xf32>
    %5 = vector.broadcast %4 : vector<1x256xf32> to vector<8x256xf32>
    %6 = arith.addf %3, %5 : vector<8x256xf32>
    %cst_5 = arith.constant 0.000000e+00 : f32
    %7 = vector.broadcast %cst_5 : f32 to vector<8x256xf32>
    %8 = arith.cmpf ogt, %6, %7 : vector<8x256xf32>
    %cst_6 = arith.constant 0.00999999977 : f32
    %9 = vector.broadcast %cst_6 : f32 to vector<8x256xf32>
    %10 = arith.mulf %9, %6 : vector<8x256xf32>
    %11 = arith.select %8, %6, %10 : vector<8x256xi1>, vector<8x256xf32>
    %12 = arith.truncf %11 : vector<8x256xf32> to vector<8x256xbf16>
    %c0_7 = arith.constant 0 : index
    %c0_8 = arith.constant 0 : index
    %13 = vector.load %arg4[%c0_7, %c0_8] : memref<256x128xbf16, #tpu.memory_space<vmem>>, vector<256x128xbf16>
    %cst_9 = arith.constant dense<0.000000e+00> : vector<8x128xf32>
    %14 = tpu.matmul %12, %13, %cst_9 {dimension_numbers = #tpu.dot_dimension_numbers<[1], [0], [0], [1], [0, 0, 1, 1], [], []>} : vector<8x256xbf16>, vector<256x128xbf16>, vector<8x128xf32> -> vector<8x128xf32>
    %c0_10 = arith.constant 0 : index
    %c0_11 = arith.constant 0 : index
    %15 = vector.load %arg5[%c0_10, %c0_11] : memref<1x128xf32, #tpu.memory_space<vmem>>, vector<1x128xf32>
    %16 = vector.broadcast %15 : vector<1x128xf32> to vector<8x128xf32>
    %17 = arith.addf %14, %16 : vector<8x128xf32>
    %18 = math.tanh %17 : vector<8x128xf32>
    %c0_12 = arith.constant 0 : index
    %c0_13 = arith.constant 0 : index
    %19 = vector.load %arg6[%c0_12, %c0_13] : memref<8x128xf32, #tpu.memory_space<vmem>>, vector<8x128xf32>
    tpu.vector_store %arg6[%c0_12, %c0_13], %18 {strides = array<i32>} : memref<8x128xf32, #tpu.memory_space<vmem>>, vector<8x128xf32>,
    return
  }
  func.func @transform_0(%arg0: i32) -> (i32, i32) {
    %c0_i32 = arith.constant 0 : i32
    %c0_i32_0 = arith.constant 0 : i32
    return %arg0, %c0_i32 : i32, i32
  }
  func.func @transform_1(%arg0: i32) -> (i32, i32) {
    %c0_i32 = arith.constant 0 : i32
    %c0_i32_0 = arith.constant 0 : i32
    %c0_i32_1 = arith.constant 0 : i32
    return %c0_i32, %c0_i32_0 : i32, i32
  }
  func.func @transform_2(%arg0: i32) -> (i32, i32) {
    %c0_i32 = arith.constant 0 : i32
    %c0_i32_0 = arith.constant 0 : i32
    %c0_i32_1 = arith.constant 0 : i32
    return %c0_i32, %c0_i32_0 : i32, i32
  }
  func.func @transform_3(%arg0: i32) -> (i32, i32) {
    %c0_i32 = arith.constant 0 : i32
    %c0_i32_0 = arith.constant 0 : i32
    %c0_i32_1 = arith.constant 0 : i32
    return %c0_i32, %c0_i32_0 : i32, i32
  }
  func.func @transform_4(%arg0: i32) -> (i32, i32) {
    %c0_i32 = arith.constant 0 : i32
    %c0_i32_0 = arith.constant 0 : i32
    %c0_i32_1 = arith.constant 0 : i32
    return %c0_i32, %c0_i32_0 : i32, i32
  }
  func.func @transform_5(%arg0: i32) -> (i32, i32) {
    %c0_i32 = arith.constant 0 : i32
    %c0_i32_0 = arith.constant 0 : i32
    return %arg0, %c0_i32 : i32, i32
  }
}

</mosaic_0001>

<llo_original>
// kernel: generator_forward.1
$region0: #{generator_forward.1}
  #allocation0 [shape = 'u32[]', space=smem, size = 0x4, offset = 0x4, fixed_abs, tag = 'smem constant byte address 0x4 - core index']
  #allocation1 [shape = 'u32[144,128]{1,0:T(1,128)}', space=vmem, size = 0x12000, scoped, tag = 'internal scratch']
  %s0 = inlined_call_operand.hbm [shape: f32[8,64], index: 0, kind: input, shape index: {}]
  %s1 = inlined_call_operand.hbm [shape: bf16[64,256], index: 1, kind: input, shape index: {}]
  %s2 = inlined_call_operand.vmem [shape: f32[1,256], index: 2, kind: input, shape index: {}]
  %s3 = inlined_call_operand.hbm [shape: bf16[256,128], index: 3, kind: input, shape index: {}]
  %s4 = inlined_call_operand.vmem [shape: f32[1,128], index: 4, kind: input, shape index: {}]
  %s5 = inlined_call_operand.hbm [shape: f32[8,128], index: 5, kind: output, shape index: {}]
  %s6 = sld [smem:[#allocation0]]
  $region42: #{generator_forward.1} parent=0
    _
  %s8 = ssub.s32 1, %s6
  %s9 = scalar_select 0, %s8, %s6
  $region1: #{generator_forward.1} parent=0
    #allocation2 [shape = 'u8[4096]{0}', space=vmem, size = 0x1000, scoped, tag = 'input window, operand 0, single buffered']
    #allocation3 [shape = 's32[1]{0}', space=sflag, size = 0x4, scoped, tag = 'scoped memory for generator_forward.1']
    #allocation4 [shape = 's32[1]{0}', space=sflag, size = 0x4, scoped, tag = 'scoped memory for generator_forward.1']
    #allocation5 [shape = 'u8[32768]{0}', space=vmem, size = 0x8000, scoped, tag = 'input window, operand 1, single buffered']
    #allocation6 [shape = 's32[1]{0}', space=sflag, size = 0x4, scoped, tag = 'scoped memory for generator_forward.1']
    #allocation7 [shape = 'u8[65536]{0}', space=vmem, size = 0x10000, scoped, tag = 'input window, operand 3, single buffered']
    #allocation8 [shape = 'u8[4096]{0}', space=vmem, size = 0x1000, scoped, tag = 'output window, operand 0, single buffered']
    %10 = vsyncpa [#allocation3], 0
    %11 = vsyncpa [#allocation6], 0
    %12 = vsyncpa [#allocation4], 0
    // Predicated region
    $region2: #{generator_forward.1} parent=1 // pred_check
      _
    $region3: #{generator_forward.1} parent=1 // pred_check_branch
      %14 = sbr.rel (0) target = $region5
    $region4: #{generator_forward.1} parent=1 // pred_region
      %s16 = ssub.s32 128, 128
      %17 = vsyncadd [#allocation3], %s16
      %s19 = sshll.u32 [#allocation2], 4
      %s20 = int_to_ptr.vmem [resolvable:$true] %s19
      %22 = dma.hbm_to_vmem [thread:$0]  %s0, 128, %s20, [#allocation3]
    $region5: #{generator_forward.1} parent=1 // pred_fallthru
      _
    // Predicated region
    $region6: #{generator_forward.1} parent=1 // pred_check
      _
    $region7: #{generator_forward.1} parent=1 // pred_check_branch
      %24 = sbr.rel (0) target = $region9
    $region8: #{generator_forward.1} parent=1 // pred_region
      %s26 = ssub.s32 1024, 1024
      %27 = vsyncadd [#allocation6], %s26
      %s28 = sshll.u32 [#allocation5], 4
      %s29 = int_to_ptr.vmem [resolvable:$true] %s28
      %34 = dma.hbm_to_vmem [thread:$0]  %s1, 1024, %s29, [#allocation6], 128, 128, 8
    $region9: #{generator_forward.1} parent=1 // pred_fallthru
      _
    // Predicated region
    $region10: #{generator_forward.1} parent=1 // pred_check
      _
    $region11: #{generator_forward.1} parent=1 // pred_check_branch
      %36 = sbr.rel (0) target = $region13
    $region12: #{generator_forward.1} parent=1 // pred_region
      _
    $region13: #{generator_forward.1} parent=1 // pred_fallthru
      _
    // Predicated region
    $region14: #{generator_forward.1} parent=1 // pred_check
      _
    $region15: #{generator_forward.1} parent=1 // pred_check_branch
      %38 = sbr.rel (0) target = $region17
    $region16: #{generator_forward.1} parent=1 // pred_region
      %s40 = ssub.s32 2048, 2048
      %41 = vsyncadd [#allocation6], %s40
      %s42 = sshll.u32 [#allocation7], 4
      %s43 = int_to_ptr.vmem [resolvable:$true] %s42
      %48 = dma.hbm_to_vmem [thread:$0]  %s3, 2048, %s43, [#allocation6], 64, 64, 4
    $region17: #{generator_forward.1} parent=1 // pred_fallthru
      _
    // Predicated region
    $region18: #{generator_forward.1} parent=1 // pred_check
      _
    $region19: #{generator_forward.1} parent=1 // pred_check_branch
      %50 = sbr.rel (0) target = $region21
    $region20: #{generator_forward.1} parent=1 // pred_region
      _
    $region21: #{generator_forward.1} parent=1 // pred_fallthru
      _
    // Predicated region
    $region22: #{generator_forward.1} parent=1 // pred_check
      _
    $region23: #{generator_forward.1} parent=1 // pred_check_branch
      %52 = sbr.rel (0) target = $region25
    $region24: #{generator_forward.1} parent=1 // pred_region
      %53 = dma.done [#allocation3], 128
    $region25: #{generator_forward.1} parent=1 // pred_fallthru
      _
    // Predicated region
    $region26: #{generator_forward.1} parent=1 // pred_check
      _
    $region27: #{generator_forward.1} parent=1 // pred_check_branch
      %55 = sbr.rel (0) target = $region29
    $region28: #{generator_forward.1} parent=1 // pred_region
      %56 = dma.done [#allocation6], 1024
    $region29: #{generator_forward.1} parent=1 // pred_fallthru
      _
    // Predicated region
    $region30: #{generator_forward.1} parent=1 // pred_check
      _
    $region31: #{generator_forward.1} parent=1 // pred_check_branch
      %58 = sbr.rel (0) target = $region33
    $region32: #{generator_forward.1} parent=1 // pred_region
      %59 = dma.done [#allocation6], 2048
    $region33: #{generator_forward.1} parent=1 // pred_fallthru
      _
    %v61 = vld [vmem:[#allocation2] sm:$0xff]
    %v62 = vpack.c.bf16 %v61, %v61
    %v63 = vld [vmem:[#allocation5] sm:$0xff]
    %v64 = vld [vmem:[#allocation5 + $0x8] sm:$0xff]
    %v65 = vld [vmem:[#allocation5 + $0x10] sm:$0xff]
    %v66 = vld [vmem:[#allocation5 + $0x18] sm:$0xff]
    %v67 = vld [vmem:[#allocation5 + $0x20] sm:$0xff]
    %v68 = vld [vmem:[#allocation5 + $0x28] sm:$0xff]
    %v69 = vld [vmem:[#allocation5 + $0x30] sm:$0xff]
    %v70 = vld [vmem:[#allocation5 + $0x38] sm:$0xff]
    %v71 = vld [vmem:[%s2] sm:$0x3]
    %v73 = vlaneseq
    %v74 = vshrl.u32 %v73, 7
    %v75 = vsub.s32 0, %v74
    %v76 = vrot.slane %v71, %v75
    %v77 = vlaneseq
    %v78 = vshrl.u32 %v77, 7
    %v79 = vsub.s32 1, %v78
    %v80 = vrot.slane %v71, %v79
    %v91 = vunpack.c.l.b16 %v63
    %v92 = vunpack.c.h.b16 %v63
    %v93 = vunpack.c.l.b16 %v64
    %v94 = vunpack.c.h.b16 %v64
    %v95 = vunpack.c.l.b16 %v65
    %v96 = vunpack.c.h.b16 %v65
    %v97 = vunpack.c.l.b16 %v66
    %v98 = vunpack.c.h.b16 %v66
    %v99 = vunpack.c.l.b16 %v67
    %v100 = vunpack.c.h.b16 %v67
    %v101 = vunpack.c.l.b16 %v68
    %v102 = vunpack.c.h.b16 %v68
    %v103 = vunpack.c.l.b16 %v69
    %v104 = vunpack.c.h.b16 %v69
    %v105 = vunpack.c.l.b16 %v70
    %v106 = vunpack.c.h.b16 %v70
    %v107 = vpack.c.b16 %v93, %v91
    %v108 = vpack.c.b16 %v94, %v92
    %v109 = vpack.c.b16 %v97, %v95
    %v110 = vpack.c.b16 %v98, %v96
    %v111 = vpack.c.b16 %v101, %v99
    %v112 = vpack.c.b16 %v102, %v100
    %v113 = vpack.c.b16 %v105, %v103
    %v114 = vpack.c.b16 %v106, %v104
    %vm123 = vcmask 523264
    %v125 = vsel %vm123, %v62, 0
    %127 = vmatprep.subr.bf16.mxu0 %v108
    %128 = vmatpush1.bf16.msra.mxu0 %v107
    %129 = vmatprep.subr.bf16.mxu0 %v110
    %130 = vmatpush1.bf16.msra.mxu0 %v109
    %131 = vmatprep.subr.bf16.mxu0 %v112
    %132 = vmatpush1.bf16.msra.mxu0 %v111
    %133 = vmatprep.subr.bf16.mxu0 %v114
    %134 = vmatpush1.bf16.msra.mxu0 %v113
    %135 = vmatprep.subr.bf16.mxu0 0
    %136 = vmatpush1.bf16.msra.mxu0 0
    %137 = vmatprep.subr.bf16.mxu0 0
    %138 = vmatpush1.bf16.msra.mxu0 0
    %139 = vmatprep.subr.bf16.mxu0 0
    %140 = vmatpush1.bf16.msra.mxu0 0
    %141 = vmatprep.subr.bf16.mxu0 0
    %142 = vmatpush1.bf16.msra.mxu0 0
    %143 = vmatprep.subr.bf16.mxu0 0
    %144 = vmatpush1.bf16.msra.mxu0 0
    %145 = vmatprep.subr.bf16.mxu0 0
    %146 = vmatpush1.bf16.msra.mxu0 0
    %147 = vmatprep.subr.bf16.mxu0 0
    %148 = vmatpush1.bf16.msra.mxu0 0
    %149 = vmatprep.subr.bf16.mxu0 0
    %150 = vmatpush1.bf16.msra.mxu0 0
    %151 = vmatprep.subr.bf16.mxu0 0
    %152 = vmatpush1.bf16.msra.mxu0 0
    %153 = vmatprep.subr.bf16.mxu0 0
    %154 = vmatpush1.bf16.msra.mxu0 0
    %155 = vmatprep.subr.bf16.mxu0 0
    %156 = vmatpush1.bf16.msra.mxu0 0
    %157 = vmatprep.subr.bf16.mxu0 0
    %158 = vmatpush1.bf16.msra.mxu0 0
    %159 = vmatprep.mubr.bf16.mxu0 0
    %160 = vmatmul.mubr.bf16.gmra.mrb[0].mxu0 %v125
    %v161 = vpop.f32.mrb[0].mxu0
    %v162 = vadd.f32 %v76, %v161
    %v163 = vpop.f32.mrb[0].mxu0
    %v164 = vadd.f32 %v80, %v163
    %v165 = vpop.f32.mrb[0].mxu0
    %v166 = vpop.f32.mrb[0].mxu0
    %167 = vdwg.mxu0
    %vm168 = vcmp.gt.f32.partialorder %v162, 0.0
    %vm169 = vcmp.gt.f32.partialorder %v164, 0.0
    %v170 = vmul.f32 %v162, 0.01
    %v171 = vmul.f32 %v164, 0.01
    %v172 = vsel %vm168, %v162, %v170
    %v173 = vsel %vm169, %v164, %v171
    %v174 = vpack.c.bf16 %v172, %v172
    %v175 = vpack.c.bf16 %v173, %v173
    %v176 = vld [vmem:[#allocation7] sm:$0xf]
    %v177 = vld [vmem:[#allocation7 + $0x4] sm:$0xf]
    %v178 = vld [vmem:[#allocation7 + $0x8] sm:$0xf]
    %v179 = vld [vmem:[#allocation7 + $0xc] sm:$0xf]
    %v180 = vld [vmem:[#allocation7 + $0x10] sm:$0xf]
    %v181 = vld [vmem:[#allocation7 + $0x14] sm:$0xf]
    %v182 = vld [vmem:[#allocation7 + $0x18] sm:$0xf]
    %v183 = vld [vmem:[#allocation7 + $0x1c] sm:$0xf]
    %v184 = vld [vmem:[#allocation7 + $0x20] sm:$0xf]
    %v185 = vld [vmem:[#allocation7 + $0x24] sm:$0xf]
    %v186 = vld [vmem:[#allocation7 + $0x28] sm:$0xf]
    %v187 = vld [vmem:[#allocation7 + $0x2c] sm:$0xf]
    %v188 = vld [vmem:[#allocation7 + $0x30] sm:$0xf]
    %v189 = vld [vmem:[#allocation7 + $0x34] sm:$0xf]
    %v190 = vld [vmem:[#allocation7 + $0x38] sm:$0xf]
    %v191 = vld [vmem:[#allocation7 + $0x3c] sm:$0xf]
    %v192 = vld [vmem:[#allocation7 + $0x40] sm:$0xf]
    %v193 = vld [vmem:[#allocation7 + $0x44] sm:$0xf]
    %v194 = vld [vmem:[#allocation7 + $0x48] sm:$0xf]
    %v195 = vld [vmem:[#allocation7 + $0x4c] sm:$0xf]
    %v196 = vld [vmem:[#allocation7 + $0x50] sm:$0xf]
    %v197 = vld [vmem:[#allocation7 + $0x54] sm:$0xf]
    %v198 = vld [vmem:[#allocation7 + $0x58] sm:$0xf]
    %v199 = vld [vmem:[#allocation7 + $0x5c] sm:$0xf]
    %v200 = vld [vmem:[#allocation7 + $0x60] sm:$0xf]
    %v201 = vld [vmem:[#allocation7 + $0x64] sm:$0xf]
    %v202 = vld [vmem:[#allocation7 + $0x68] sm:$0xf]
    %v203 = vld [vmem:[#allocation7 + $0x6c] sm:$0xf]
    %v204 = vld [vmem:[#allocation7 + $0x70] sm:$0xf]
    %v205 = vld [vmem:[#allocation7 + $0x74] sm:$0xf]
    %v206 = vld [vmem:[#allocation7 + $0x78] sm:$0xf]
    %v207 = vld [vmem:[#allocation7 + $0x7c] sm:$0xf]
    %v208 = vld [vmem:[%s4] sm:$0x1]
    %v210 = vlaneseq
    %v211 = vshrl.u32 %v210, 7
    %v212 = vsub.s32 0, %v211
    %v213 = vrot.slane %v208, %v212
    %v247 = vunpack.c.l.b16 %v176
    %v248 = vunpack.c.l.b16 %v177
    %v249 = vunpack.c.l.b16 %v178
    %v250 = vunpack.c.l.b16 %v179
    %v251 = vunpack.c.l.b16 %v180
    %v252 = vunpack.c.l.b16 %v181
    %v253 = vunpack.c.l.b16 %v182
    %v254 = vunpack.c.l.b16 %v183
    %v255 = vunpack.c.l.b16 %v184
    %v256 = vunpack.c.l.b16 %v185
    %v257 = vunpack.c.l.b16 %v186
    %v258 = vunpack.c.l.b16 %v187
    %v259 = vunpack.c.l.b16 %v188
    %v260 = vunpack.c.l.b16 %v189
    %v261 = vunpack.c.l.b16 %v190
    %v262 = vunpack.c.l.b16 %v191
    %v263 = vunpack.c.l.b16 %v192
    %v264 = vunpack.c.l.b16 %v193
    %v265 = vunpack.c.l.b16 %v194
    %v266 = vunpack.c.l.b16 %v195
    %v267 = vunpack.c.l.b16 %v196
    %v268 = vunpack.c.l.b16 %v197
    %v269 = vunpack.c.l.b16 %v198
    %v270 = vunpack.c.l.b16 %v199
    %v271 = vunpack.c.l.b16 %v200
    %v272 = vunpack.c.l.b16 %v201
    %v273 = vunpack.c.l.b16 %v202
    %v274 = vunpack.c.l.b16 %v203
    %v275 = vunpack.c.l.b16 %v204
    %v276 = vunpack.c.l.b16 %v205
    %v277 = vunpack.c.l.b16 %v206
    %v278 = vunpack.c.l.b16 %v207
    %v279 = vpack.c.b16 %v248, %v247
    %v280 = vpack.c.b16 %v250, %v249
    %v281 = vpack.c.b16 %v252, %v251
    %v282 = vpack.c.b16 %v254, %v253
    %v283 = vpack.c.b16 %v256, %v255
    %v284 = vpack.c.b16 %v258, %v257
    %v285 = vpack.c.b16 %v260, %v259
    %v286 = vpack.c.b16 %v262, %v261
    %v287 = vpack.c.b16 %v264, %v263
    %v288 = vpack.c.b16 %v266, %v265
    %v289 = vpack.c.b16 %v268, %v267
    %v290 = vpack.c.b16 %v270, %v269
    %v291 = vpack.c.b16 %v272, %v271
    %v292 = vpack.c.b16 %v274, %v273
    %v293 = vpack.c.b16 %v276, %v275
    %v294 = vpack.c.b16 %v278, %v277
    %311 = vmatprep.subr.bf16.mxu0 0
    %312 = vmatpush1.bf16.msra.mxu0 %v279
    %313 = vmatprep.subr.bf16.mxu0 0
    %314 = vmatpush1.bf16.msra.mxu0 %v280
    %315 = vmatprep.subr.bf16.mxu0 0
    %316 = vmatpush1.bf16.msra.mxu0 %v281
    %317 = vmatprep.subr.bf16.mxu0 0
    %318 = vmatpush1.bf16.msra.mxu0 %v282
    %319 = vmatprep.subr.bf16.mxu0 0
    %320 = vmatpush1.bf16.msra.mxu0 %v283
    %321 = vmatprep.subr.bf16.mxu0 0
    %322 = vmatpush1.bf16.msra.mxu0 %v284
    %323 = vmatprep.subr.bf16.mxu0 0
    %324 = vmatpush1.bf16.msra.mxu0 %v285
    %325 = vmatprep.subr.bf16.mxu0 0
    %326 = vmatpush1.bf16.msra.mxu0 %v286
    %327 = vmatprep.subr.bf16.mxu0 0
    %328 = vmatpush1.bf16.msra.mxu0 %v287
    %329 = vmatprep.subr.bf16.mxu0 0
    %330 = vmatpush1.bf16.msra.mxu0 %v288
    %331 = vmatprep.subr.bf16.mxu0 0
    %332 = vmatpush1.bf16.msra.mxu0 %v289
    %333 = vmatprep.subr.bf16.mxu0 0
    %334 = vmatpush1.bf16.msra.mxu0 %v290
    %335 = vmatprep.subr.bf16.mxu0 0
    %336 = vmatpush1.bf16.msra.mxu0 %v291
    %337 = vmatprep.subr.bf16.mxu0 0
    %338 = vmatpush1.bf16.msra.mxu0 %v292
    %339 = vmatprep.subr.bf16.mxu0 0
    %340 = vmatpush1.bf16.msra.mxu0 %v293
    %341 = vmatprep.subr.bf16.mxu0 0
    %342 = vmatpush1.bf16.msra.mxu0 %v294
    %343 = vmatprep.mubr.bf16.mxu0 %v175
    %344 = vmatmul.mubr.bf16.gmra.mrb[0].mxu0 %v174
    %v345 = vpop.f32.mrb[0].mxu0
    %v346 = vadd.f32 %v213, %v345
    %v347 = vpop.f32.mrb[0].mxu0
    %v348 = vpop.f32.mrb[0].mxu0
    %v349 = vpop.f32.mrb[0].mxu0
    %350 = vdwg.mxu0
    %v351 = vtanh.pop %v346
    %352 = vst [vmem:[#allocation8] sm:$0xff] %v351
    // Predicated region
    $region34: #{generator_forward.1} parent=1 // pred_check
      _
    $region35: #{generator_forward.1} parent=1 // pred_check_branch
      %354 = sbr.rel (0) target = $region37
    $region36: #{generator_forward.1} parent=1 // pred_region
      %s356 = ssub.s32 128, 128
      %357 = vsyncadd [#allocation4], %s356
      %s359 = sshll.u32 [#allocation8], 4
      %s360 = int_to_ptr.vmem [resolvable:$true] %s359
      %362 = dma.vmem_to_hbm [thread:$0]  %s360, 128, %s5, [#allocation4]
    $region37: #{generator_forward.1} parent=1 // pred_fallthru
      _
    // Predicated region
    $region38: #{generator_forward.1} parent=1 // pred_check
      _
    $region39: #{generator_forward.1} parent=1 // pred_check_branch
      %364 = sbr.rel (0) target = $region41
    $region40: #{generator_forward.1} parent=1 // pred_region
      %365 = dma.done [#allocation4], 128
    $region41: #{generator_forward.1} parent=1 // pred_fallthru
      _
    %366 = vsyncpa [#allocation3], 1
    %367 = vsyncpa [#allocation6], 1
    %368 = vsyncpa [#allocation4], 1

</llo_original>
